<compile_context>
chip_gen: v6e
topology: v6e:2x2x1
jax: 0.10.0
libtpu: 0.0.40
codegen_flags: <defaults>
</compile_context>

<pallas_src>
import jax
import jax.numpy as jnp
from jax.experimental import pallas as pl
from jax.experimental.pallas import tpu as pltpu


# ----------------------------------------------------------------------------
# helpers
# ----------------------------------------------------------------------------
def _round_up(x, m):
    return ((x + m - 1) // m) * m


def _choose_block_m(n):
    """Batch-tile heuristic.

    Per-grid-step overhead is ~0.35us, so use the biggest tile that fits VMEM
    (activations here are tiny), capped at 512 rows.  Once the batch is large
    enough, keep >=2 grid steps so dimension_semantics=("parallel",) can shard
    the batch axis across the two TensorCores on v7x.
    """
    if n <= 256:
        return _round_up(max(n, 8), 8)          # one tile; overhead dominates
    return min(512, _round_up(-(-n // 2), 8))   # >=2 steps, <=512 rows/step


def _vmem_estimate(block_m, d_in, h1, h2, in_bytes, out_bytes):
    """Rough double-buffered VMEM footprint of one grid step (bytes)."""
    d_out = h2 + d_in
    x_buf = 2 * block_m * d_in * in_bytes                       # input tile
    o_buf = 2 * block_m * d_out * out_bytes                     # output slab
    w_buf = 2 * in_bytes * (d_in * h1 + h1 * h2 + h2 * h1 + h1 * d_in)
    b_buf = 2 * 4 * (h1 + h2 + h1 + d_in)                       # f32 biases
    acts = 4 * block_m * (h1 + h2 + h1 + d_out)                 # f32 intermediates
    return x_buf + o_buf + w_buf + b_buf + acts


# ----------------------------------------------------------------------------
# Pallas kernel: full autoencoder forward on one batch tile.
# ----------------------------------------------------------------------------
def _ae_kernel(x_ref,
               w1_ref, b1_ref,   # encoder Linear(d_in -> h1)
               w2_ref, b2_ref,   # encoder Linear(h1   -> h2)
               w3_ref, b3_ref,   # decoder Linear(h2   -> h1)
               w4_ref, b4_ref,   # decoder Linear(h1   -> d_in)
               out_ref):         # fused [z | x_re] slab
    f32 = jnp.float32
    cdt = w1_ref.dtype            # MXU compute dtype (bf16 or f32)

    x = x_ref[...]

    # encoder: Linear -> ReLU -> Linear   (MXU matmuls accumulate in f32)
    h1 = jnp.dot(x, w1_ref[...], preferred_element_type=f32) + b1_ref[...]
    h1 = jnp.maximum(h1, 0.0)
    z = jnp.dot(h1.astype(cdt), w2_ref[...], preferred_element_type=f32) + b2_ref[...]

    # decoder: Linear -> ReLU -> Linear
    h2 = jnp.dot(z.astype(cdt), w3_ref[...], preferred_element_type=f32) + b3_ref[...]
    h2 = jnp.maximum(h2, 0.0)
    x_re = jnp.dot(h2.astype(cdt), w4_ref[...], preferred_element_type=f32) + b4_ref[...]

    # One fused store: a single (block_m, h2 + d_in) slab instead of two
    # lane-sparse outputs (z last dim 8, x_re last dim ~12-24).
    out_ref[...] = jnp.concatenate([z, x_re], axis=-1).astype(out_ref.dtype)


# ----------------------------------------------------------------------------
# wrapper
# ----------------------------------------------------------------------------
def autoencoder_forward(x, params, *, block_m=None):
    """One AutoEncoder forward.

    x:       [N, d_in]
    params:  w1..w4 stored as (in, out), b1..b4 stored as (1, out) float32.
    Returns (z [N, h2], x_re [N, d_in]) in the weights' compute dtype.
    """
    n, d_in = x.shape
    h1 = params["w1"].shape[1]
    h2 = params["w2"].shape[1]
    d_out = h2 + d_in

    compute_dtype = params["w1"].dtype
    x = x.astype(compute_dtype)
    elem_bytes = jnp.dtype(compute_dtype).itemsize

    if block_m is None:
        block_m = _choose_block_m(n)
    block_m = max(8, _round_up(int(block_m), 8))
    grid_m = -(-n // block_m)                   # cdiv
    n_pad = grid_m * block_m
    if n_pad != n:
        # ragged batch: zero-pad; padded rows produce bias-only junk that is
        # sliced off below.
        x = jnp.pad(x, ((0, n_pad - n), (0, 0)))

    def x_map(i):
        return (i, 0)

    def rep_map(i):                             # weights/biases: same block every step
        return (0, 0)

    # NOTE: replicated operands still get 2 pipeline buffers each; at these
    # weight sizes that is noise.  If hidden dims grow into the MBs, switch the
    # weight specs to pipeline_mode=pl.Buffered(1) to reclaim VMEM (matters
    # first on v7x's 64 MiB).
    rep_spec = lambda arr: pl.BlockSpec(arr.shape, rep_map)

    est = _vmem_estimate(block_m, d_in, h1, h2, elem_bytes, elem_bytes)
    vmem_limit = None
    if est > 16 * 1024 * 1024:                  # above v5e's scoped default
        vmem_limit = min(int(est * 2), 96 * 1024 * 1024)

    out = pl.pallas_call(
        _ae_kernel,
        out_shape=jax.ShapeDtypeStruct((n_pad, d_out), compute_dtype),
        grid_spec=pltpu.PrefetchScalarGridSpec(
            num_scalar_prefetch=0,
            grid=(grid_m,),
            in_specs=[
                pl.BlockSpec((block_m, d_in), x_map),
                rep_spec(params["w1"]), rep_spec(params["b1"]),
                rep_spec(params["w2"]), rep_spec(params["b2"]),
                rep_spec(params["w3"]), rep_spec(params["b3"]),
                rep_spec(params["w4"]), rep_spec(params["b4"]),
            ],
            out_specs=pl.BlockSpec((block_m, d_out), x_map),
        ),
        compiler_params=pltpu.CompilerParams(
            dimension_semantics=("parallel",),
            vmem_limit_bytes=vmem_limit),
    )(x,
      params["w1"], params["b1"], params["w2"], params["b2"],
      params["w3"], params["b3"], params["w4"], params["b4"])

    z = out[:n, :h2]
    x_re = out[:n, h2:]
    return z, x_re


# ----------------------------------------------------------------------------
# init + pure-JAX reference
# ----------------------------------------------------------------------------
def init_autoencoder_params(key, layer_sizes, param_dtype=jnp.bfloat16):
    """layer_sizes = [d_in, h1, h2].  Weights stored (in, out) in param_dtype,
    biases kept float32 (the kernel's bias-add / ReLU run in f32)."""
    d_in, h1, h2 = layer_sizes
    dims = [(d_in, h1), (h1, h2), (h2, h1), (h1, d_in)]
    params = {}
    for idx, (fan_in, fan_out) in enumerate(dims, start=1):
        key, kw, kb = jax.random.split(key, 3)
        bound = fan_in ** -0.5
        params[f"w{idx}"] = jax.random.uniform(
            kw, (fan_in, fan_out), jnp.float32, -bound, bound).astype(param_dtype)
        params[f"b{idx}"] = jax.random.uniform(
            kb, (1, fan_out), jnp.float32, -bound, bound)
    return params


def _ae_ref(x, p):
    """Pure-JAX reference mirroring the kernel's numerics: activations rounded
    to the weight dtype before each matmul, matmuls accumulated in f32."""
    f32 = jnp.float32
    cdt = p["w1"].dtype
    hi = jax.lax.Precision.HIGHEST

    def lin(a, w, b):
        return jnp.dot(a.astype(cdt).astype(f32), w.astype(f32), precision=hi) + b

    h1 = jnp.maximum(lin(x, p["w1"], p["b1"]), 0.0)
    z = lin(h1, p["w2"], p["b2"])
    h2 = jnp.maximum(lin(z, p["w3"], p["b3"]), 0.0)
    x_re = lin(h2, p["w4"], p["b4"])
    return z, x_re


# ----------------------------------------------------------------------------
# self-test
# ----------------------------------------------------------------------------
if __name__ == "__main__":
    key = jax.random.PRNGKey(0)

    # (batch, d_in, (h1, h2), param dtype, tolerance)
    configs = [
        (16,   20, (32, 8), jnp.bfloat16, 5e-2),   # tiny batch, bf16 path
        (1040, 12, (32, 8), jnp.bfloat16, 5e-2),   # multi-step grid + ragged pad
        (100,  24, (32, 8), jnp.float32,  1e-4),   # f32 path, tight tolerance
    ]

    for n, d_in, (h1, h2), dtype, tol in configs:
        key, kx, kp = jax.random.split(key, 3)
        x = jax.random.normal(kx, (n, d_in), jnp.float32).astype(dtype)
        params = init_autoencoder_params(kp, [d_in, h1, h2], param_dtype=dtype)

        z, x_re = autoencoder_forward(x, params)
        jax.block_until_ready((z, x_re))

        assert z.shape == (n, h2), z.shape
        assert x_re.shape == (n, d_in), x_re.shape

        z_ref, x_re_ref = _ae_ref(x, params)
        assert jnp.allclose(z.astype(jnp.float32), z_ref, atol=tol, rtol=tol), \
            f"z mismatch for config n={n}, d_in={d_in}, dtype={dtype}"
        assert jnp.allclose(x_re.astype(jnp.float32), x_re_ref, atol=tol, rtol=tol), \
            f"x_re mismatch for config n={n}, d_in={d_in}, dtype={dtype}"

    # reconstruction-loss style glue (tiny reduction, plain JAX, not a hot path)
    loss = jnp.mean(jnp.sum((x.astype(jnp.float32) - x_re.astype(jnp.float32)) ** 2, axis=1))
    jax.block_until_ready(loss)

    print("KERNEL_OK")
</pallas_src>

<mosaic_0001>
module attributes {stable_mosaic.version = 11 : i64} {
  func.func @_ae_kernel(%arg0: i32, %arg1: memref<16x20xbf16, #tpu.memory_space<vmem>>, %arg2: memref<20x32xbf16, #tpu.memory_space<vmem>>, %arg3: memref<1x32xf32, #tpu.memory_space<vmem>>, %arg4: memref<32x8xbf16, #tpu.memory_space<vmem>>, %arg5: memref<1x8xf32, #tpu.memory_space<vmem>>, %arg6: memref<8x32xbf16, #tpu.memory_space<vmem>>, %arg7: memref<1x32xf32, #tpu.memory_space<vmem>>, %arg8: memref<32x20xbf16, #tpu.memory_space<vmem>>, %arg9: memref<1x20xf32, #tpu.memory_space<vmem>>, %arg10: memref<16x28xbf16, #tpu.memory_space<vmem>>) attributes {dimension_semantics = [#tpu.dimension_semantics<parallel>], iteration_bounds = array<i64: 1>, scalar_prefetch = 0 : i64, scratch_operands = 0 : i64, tpu.core_type = #tpu.core_type<tc>, window_params = [{transform_indices = @transform_0, window_bounds = array<i64: 16, 20>}, {pipeline_mode = #tpu.pipeline_mode<synchronous>, transform_indices = @transform_1, window_bounds = array<i64: 20, 32>}, {pipeline_mode = #tpu.pipeline_mode<synchronous>, transform_indices = @transform_2, window_bounds = array<i64: 1, 32>}, {pipeline_mode = #tpu.pipeline_mode<synchronous>, transform_indices = @transform_3, window_bounds = array<i64: 32, 8>}, {pipeline_mode = #tpu.pipeline_mode<synchronous>, transform_indices = @transform_4, window_bounds = array<i64: 1, 8>}, {pipeline_mode = #tpu.pipeline_mode<synchronous>, transform_indices = @transform_5, window_bounds = array<i64: 8, 32>}, {pipeline_mode = #tpu.pipeline_mode<synchronous>, transform_indices = @transform_6, window_bounds = array<i64: 1, 32>}, {pipeline_mode = #tpu.pipeline_mode<synchronous>, transform_indices = @transform_7, window_bounds = array<i64: 32, 20>}, {pipeline_mode = #tpu.pipeline_mode<synchronous>, transform_indices = @transform_8, window_bounds = array<i64: 1, 20>}, {transform_indices = @transform_9, window_bounds = array<i64: 16, 28>}]} {
    %c0 = arith.constant 0 : index
    %c0_0 = arith.constant 0 : index
    %0 = vector.load %arg1[%c0, %c0_0] : memref<16x20xbf16, #tpu.memory_space<vmem>>, vector<16x20xbf16>
    %c0_1 = arith.constant 0 : index
    %c0_2 = arith.constant 0 : index
    %1 = vector.load %arg2[%c0_1, %c0_2] : memref<20x32xbf16, #tpu.memory_space<vmem>>, vector<20x32xbf16>
    %cst = arith.constant dense<0.000000e+00> : vector<16x32xf32>
    %2 = tpu.matmul %0, %1, %cst {dimension_numbers = #tpu.dot_dimension_numbers<[1], [0], [0], [1], [0, 0, 1, 1], [], []>} : vector<16x20xbf16>, vector<20x32xbf16>, vector<16x32xf32> -> vector<16x32xf32>
    %c0_3 = arith.constant 0 : index
    %c0_4 = arith.constant 0 : index
    %3 = vector.load %arg3[%c0_3, %c0_4] : memref<1x32xf32, #tpu.memory_space<vmem>>, vector<1x32xf32>
    %4 = vector.broadcast %3 : vector<1x32xf32> to vector<16x32xf32>
    %5 = arith.addf %2, %4 : vector<16x32xf32>
    %cst_5 = arith.constant 0.000000e+00 : f32
    %6 = vector.broadcast %cst_5 : f32 to vector<16x32xf32>
    %7 = arith.maximumf %5, %6 : vector<16x32xf32>
    %8 = arith.truncf %7 : vector<16x32xf32> to vector<16x32xbf16>
    %c0_6 = arith.constant 0 : index
    %c0_7 = arith.constant 0 : index
    %9 = vector.load %arg4[%c0_6, %c0_7] : memref<32x8xbf16, #tpu.memory_space<vmem>>, vector<32x8xbf16>
    %cst_8 = arith.constant dense<0.000000e+00> : vector<16x8xf32>
    %10 = tpu.matmul %8, %9, %cst_8 {dimension_numbers = #tpu.dot_dimension_numbers<[1], [0], [0], [1], [0, 0, 1, 1], [], []>} : vector<16x32xbf16>, vector<32x8xbf16>, vector<16x8xf32> -> vector<16x8xf32>
    %c0_9 = arith.constant 0 : index
    %c0_10 = arith.constant 0 : index
    %11 = vector.load %arg5[%c0_9, %c0_10] : memref<1x8xf32, #tpu.memory_space<vmem>>, vector<1x8xf32>
    %12 = vector.broadcast %11 : vector<1x8xf32> to vector<16x8xf32>
    %13 = arith.addf %10, %12 : vector<16x8xf32>
    %14 = arith.truncf %13 : vector<16x8xf32> to vector<16x8xbf16>
    %c0_11 = arith.constant 0 : index
    %c0_12 = arith.constant 0 : index
    %15 = vector.load %arg6[%c0_11, %c0_12] : memref<8x32xbf16, #tpu.memory_space<vmem>>, vector<8x32xbf16>
    %cst_13 = arith.constant dense<0.000000e+00> : vector<16x32xf32>
    %16 = tpu.matmul %14, %15, %cst_13 {dimension_numbers = #tpu.dot_dimension_numbers<[1], [0], [0], [1], [0, 0, 1, 1], [], []>} : vector<16x8xbf16>, vector<8x32xbf16>, vector<16x32xf32> -> vector<16x32xf32>
    %c0_14 = arith.constant 0 : index
    %c0_15 = arith.constant 0 : index
    %17 = vector.load %arg7[%c0_14, %c0_15] : memref<1x32xf32, #tpu.memory_space<vmem>>, vector<1x32xf32>
    %18 = vector.broadcast %17 : vector<1x32xf32> to vector<16x32xf32>
    %19 = arith.addf %16, %18 : vector<16x32xf32>
    %cst_16 = arith.constant 0.000000e+00 : f32
    %20 = vector.broadcast %cst_16 : f32 to vector<16x32xf32>
    %21 = arith.maximumf %19, %20 : vector<16x32xf32>
    %22 = arith.truncf %21 : vector<16x32xf32> to vector<16x32xbf16>
    %c0_17 = arith.constant 0 : index
    %c0_18 = arith.constant 0 : index
    %23 = vector.load %arg8[%c0_17, %c0_18] : memref<32x20xbf16, #tpu.memory_space<vmem>>, vector<32x20xbf16>
    %cst_19 = arith.constant dense<0.000000e+00> : vector<16x20xf32>
    %24 = tpu.matmul %22, %23, %cst_19 {dimension_numbers = #tpu.dot_dimension_numbers<[1], [0], [0], [1], [0, 0, 1, 1], [], []>} : vector<16x32xbf16>, vector<32x20xbf16>, vector<16x20xf32> -> vector<16x20xf32>
    %c0_20 = arith.constant 0 : index
    %c0_21 = arith.constant 0 : index
    %25 = vector.load %arg9[%c0_20, %c0_21] : memref<1x20xf32, #tpu.memory_space<vmem>>, vector<1x20xf32>
    %26 = vector.broadcast %25 : vector<1x20xf32> to vector<16x20xf32>
    %27 = arith.addf %24, %26 : vector<16x20xf32>
    %28 = tpu.concatenate %13, %27 in 1 : vector<16x8xf32>, vector<16x20xf32> -> vector<16x28xf32>
    %29 = arith.truncf %28 : vector<16x28xf32> to vector<16x28xbf16>
    %c0_22 = arith.constant 0 : index
    %c0_23 = arith.constant 0 : index
    %30 = vector.load %arg10[%c0_22, %c0_23] : memref<16x28xbf16, #tpu.memory_space<vmem>>, vector<16x28xbf16>
    tpu.vector_store %arg10[%c0_22, %c0_23], %29 {strides = array<i32>} : memref<16x28xbf16, #tpu.memory_space<vmem>>, vector<16x28xbf16>,
    return
  }
  func.func @transform_0(%arg0: i32) -> (i32, i32) {
    %c0_i32 = arith.constant 0 : i32
    %c0_i32_0 = arith.constant 0 : i32
    return %arg0, %c0_i32 : i32, i32
  }
  func.func @transform_1(%arg0: i32) -> (i32, i32) {
    %c0_i32 = arith.constant 0 : i32
    %c0_i32_0 = arith.constant 0 : i32
    %c0_i32_1 = arith.constant 0 : i32
    return %c0_i32, %c0_i32_0 : i32, i32
  }
  func.func @transform_2(%arg0: i32) -> (i32, i32) {
    %c0_i32 = arith.constant 0 : i32
    %c0_i32_0 = arith.constant 0 : i32
    %c0_i32_1 = arith.constant 0 : i32
    return %c0_i32, %c0_i32_0 : i32, i32
  }
  func.func @transform_3(%arg0: i32) -> (i32, i32) {
    %c0_i32 = arith.constant 0 : i32
    %c0_i32_0 = arith.constant 0 : i32
    %c0_i32_1 = arith.constant 0 : i32
    return %c0_i32, %c0_i32_0 : i32, i32
  }
  func.func @transform_4(%arg0: i32) -> (i32, i32) {
    %c0_i32 = arith.constant 0 : i32
    %c0_i32_0 = arith.constant 0 : i32
    %c0_i32_1 = arith.constant 0 : i32
    return %c0_i32, %c0_i32_0 : i32, i32
  }
  func.func @transform_5(%arg0: i32) -> (i32, i32) {
    %c0_i32 = arith.constant 0 : i32
    %c0_i32_0 = arith.constant 0 : i32
    %c0_i32_1 = arith.constant 0 : i32
    return %c0_i32, %c0_i32_0 : i32, i32
  }
  func.func @transform_6(%arg0: i32) -> (i32, i32) {
    %c0_i32 = arith.constant 0 : i32
    %c0_i32_0 = arith.constant 0 : i32
    %c0_i32_1 = arith.constant 0 : i32
    return %c0_i32, %c0_i32_0 : i32, i32
  }
  func.func @transform_7(%arg0: i32) -> (i32, i32) {
    %c0_i32 = arith.constant 0 : i32
    %c0_i32_0 = arith.constant 0 : i32
    %c0_i32_1 = arith.constant 0 : i32
    return %c0_i32, %c0_i32_0 : i32, i32
  }
  func.func @transform_8(%arg0: i32) -> (i32, i32) {
    %c0_i32 = arith.constant 0 : i32
    %c0_i32_0 = arith.constant 0 : i32
    %c0_i32_1 = arith.constant 0 : i32
    return %c0_i32, %c0_i32_0 : i32, i32
  }
  func.func @transform_9(%arg0: i32) -> (i32, i32) {
    %c0_i32 = arith.constant 0 : i32
    %c0_i32_0 = arith.constant 0 : i32
    return %arg0, %c0_i32 : i32, i32
  }
}

</mosaic_0001>

<llo_original>
// kernel: tpu_custom_call.1
$region0: #{tpu_custom_call.1}
  #allocation0 [shape = 'u32[]', space=smem, size = 0x4, offset = 0x4, fixed_abs, tag = 'smem constant byte address 0x4 - core index']
  #allocation1 [shape = 'u32[144,128]{1,0:T(1,128)}', space=vmem, size = 0x12000, scoped, tag = 'internal scratch']
  %s0 = inlined_call_operand.vmem [shape: bf16[16,20], index: 0, kind: input, shape index: {}]
  %s1 = inlined_call_operand.vmem [shape: bf16[20,32], index: 1, kind: input, shape index: {}]
  %s2 = inlined_call_operand.vmem [shape: f32[1,32], index: 2, kind: input, shape index: {}]
  %s3 = inlined_call_operand.vmem [shape: bf16[32,8], index: 3, kind: input, shape index: {}]
  %s4 = inlined_call_operand.vmem [shape: f32[1,8], index: 4, kind: input, shape index: {}]
  %s5 = inlined_call_operand.vmem [shape: bf16[8,32], index: 5, kind: input, shape index: {}]
  %s6 = inlined_call_operand.vmem [shape: f32[1,32], index: 6, kind: input, shape index: {}]
  %s7 = inlined_call_operand.vmem [shape: bf16[32,20], index: 7, kind: input, shape index: {}]
  %s8 = inlined_call_operand.vmem [shape: f32[1,20], index: 8, kind: input, shape index: {}]
  %s9 = inlined_call_operand.hbm [shape: bf16[16,28], index: 9, kind: output, shape index: {}]
  %s10 = sld [smem:[#allocation0]]
  $region46: #{tpu_custom_call.1} parent=0
    _
  %s12 = ssub.s32 1, %s10
  %s13 = scalar_select 0, %s12, %s10
  $region1: #{tpu_custom_call.1} parent=0
    #allocation2 [shape = 'u8[4096]{0}', space=vmem, size = 0x1000, scoped, tag = 'output window, operand 0, single buffered']
    #allocation3 [shape = 's32[1]{0}', space=sflag, size = 0x4, scoped, tag = 'scoped memory for tpu_custom_call.1']
    %14 = vsyncpa [#allocation3], 0
    // Predicated region
    $region2: #{tpu_custom_call.1} parent=1 // pred_check
      _
    $region3: #{tpu_custom_call.1} parent=1 // pred_check_branch
      %16 = sbr.rel (0) target = $region5
    $region4: #{tpu_custom_call.1} parent=1 // pred_region
      _
    $region5: #{tpu_custom_call.1} parent=1 // pred_fallthru
      _
    // Predicated region
    $region6: #{tpu_custom_call.1} parent=1 // pred_check
      _
    $region7: #{tpu_custom_call.1} parent=1 // pred_check_branch
      %18 = sbr.rel (0) target = $region9
    $region8: #{tpu_custom_call.1} parent=1 // pred_region
      _
    $region9: #{tpu_custom_call.1} parent=1 // pred_fallthru
      _
    // Predicated region
    $region10: #{tpu_custom_call.1} parent=1 // pred_check
      _
    $region11: #{tpu_custom_call.1} parent=1 // pred_check_branch
      %20 = sbr.rel (0) target = $region13
    $region12: #{tpu_custom_call.1} parent=1 // pred_region
      _
    $region13: #{tpu_custom_call.1} parent=1 // pred_fallthru
      _
    // Predicated region
    $region14: #{tpu_custom_call.1} parent=1 // pred_check
      _
    $region15: #{tpu_custom_call.1} parent=1 // pred_check_branch
      %22 = sbr.rel (0) target = $region17
    $region16: #{tpu_custom_call.1} parent=1 // pred_region
      _
    $region17: #{tpu_custom_call.1} parent=1 // pred_fallthru
      _
    // Predicated region
    $region18: #{tpu_custom_call.1} parent=1 // pred_check
      _
    $region19: #{tpu_custom_call.1} parent=1 // pred_check_branch
      %24 = sbr.rel (0) target = $region21
    $region20: #{tpu_custom_call.1} parent=1 // pred_region
      _
    $region21: #{tpu_custom_call.1} parent=1 // pred_fallthru
      _
    // Predicated region
    $region22: #{tpu_custom_call.1} parent=1 // pred_check
      _
    $region23: #{tpu_custom_call.1} parent=1 // pred_check_branch
      %26 = sbr.rel (0) target = $region25
    $region24: #{tpu_custom_call.1} parent=1 // pred_region
      _
    $region25: #{tpu_custom_call.1} parent=1 // pred_fallthru
      _
    // Predicated region
    $region26: #{tpu_custom_call.1} parent=1 // pred_check
      _
    $region27: #{tpu_custom_call.1} parent=1 // pred_check_branch
      %28 = sbr.rel (0) target = $region29
    $region28: #{tpu_custom_call.1} parent=1 // pred_region
      _
    $region29: #{tpu_custom_call.1} parent=1 // pred_fallthru
      _
    // Predicated region
    $region30: #{tpu_custom_call.1} parent=1 // pred_check
      _
    $region31: #{tpu_custom_call.1} parent=1 // pred_check_branch
      %30 = sbr.rel (0) target = $region33
    $region32: #{tpu_custom_call.1} parent=1 // pred_region
      _
    $region33: #{tpu_custom_call.1} parent=1 // pred_fallthru
      _
    // Predicated region
    $region34: #{tpu_custom_call.1} parent=1 // pred_check
      _
    $region35: #{tpu_custom_call.1} parent=1 // pred_check_branch
      %32 = sbr.rel (0) target = $region37
    $region36: #{tpu_custom_call.1} parent=1 // pred_region
      _
    $region37: #{tpu_custom_call.1} parent=1 // pred_fallthru
      _
    %v34 = vld [vmem:[%s0] sm:$0xf]
    %v35 = vld [vmem:[%s0 + $0x4] sm:$0xf]
    %v36 = vld [vmem:[%s1] sm:$0xf]
    %v37 = vld [vmem:[%s1 + $0x4] sm:$0xf]
    %v38 = vld [vmem:[%s1 + $0x8] sm:$0x3]
    %v39 = vld [vmem:[%s2] sm:$0x1]
    %v41 = vlaneseq
    %v42 = vshrl.u32 %v41, 7
    %v43 = vsub.s32 0, %v42
    %v44 = vrot.slane %v39, %v43
    %v48 = vunpack.c.l.b16 %v34
    %v49 = vunpack.c.l.b16 %v35
    %v50 = vpack.c.b16 %v49, %v48
    %v54 = vunpack.c.l.b16 %v36
    %v55 = vunpack.c.l.b16 %v37
    %v56 = vunpack.c.l.b16 %v38
    %v57 = vpack.c.b16 %v55, %v54
    %v58 = vpack.c.b16 %v56, %v56
    %vm60 = vcmask 162816
    %v62 = vsel %vm60, %v50, 0
    %vm64 = vcmask 1041408
    %v66 = vsel %vm64, %v58, 0
    %68 = vmatprep.subr.bf16.mxu0 0
    %69 = vmatpush1.bf16.msra.mxu0 0
    %70 = vmatprep.subr.bf16.mxu0 0
    %71 = vmatpush1.bf16.msra.mxu0 0
    %72 = vmatprep.subr.bf16.mxu0 0
    %73 = vmatpush1.bf16.msra.mxu0 0
    %74 = vmatprep.subr.bf16.mxu0 0
    %75 = vmatpush1.bf16.msra.mxu0 0
    %76 = vmatprep.subr.bf16.mxu0 0
    %77 = vmatpush1.bf16.msra.mxu0 0
    %78 = vmatprep.subr.bf16.mxu0 0
    %79 = vmatpush1.bf16.msra.mxu0 0
    %80 = vmatprep.subr.bf16.mxu0 0
    %81 = vmatpush1.bf16.msra.mxu0 %v66
    %82 = vmatprep.subr.bf16.mxu0 0
    %83 = vmatpush1.bf16.msra.mxu0 %v57
    %84 = vmatprep.subr.bf16.mxu0 0
    %85 = vmatpush2.bf16.msra.mxu0 0
    %86 = vmatprep.subr.bf16.mxu0 0
    %87 = vmatpush2.bf16.msra.mxu0 0
    %88 = vmatprep.subr.bf16.mxu0 0
    %89 = vmatpush2.bf16.msra.mxu0 0
    %90 = vmatprep.subr.bf16.mxu0 0
    %91 = vmatpush2.bf16.msra.mxu0 0
    %92 = vmatprep.subr.bf16.mxu0 0
    %93 = vmatpush2.bf16.msra.mxu0 0
    %94 = vmatprep.subr.bf16.mxu0 0
    %95 = vmatpush2.bf16.msra.mxu0 0
    %96 = vmatprep.subr.bf16.mxu0 0
    %97 = vmatpush2.bf16.msra.mxu0 0
    %98 = vmatprep.subr.bf16.mxu0 0
    %99 = vmatpush2.bf16.msra.mxu0 0
    %100 = vmatprep.mubr.bf16.mxu0 0
    %101 = vmatmul.mubr.bf16.gmra.mxu0 %v62
    %v102 = vpop.f32.mrf.mxu0
    %v103 = vadd.f32 %v44, %v102
    %v104 = vpop.f32.mrf.mxu0
    %v105 = vpop.f32.mrf.mxu0
    %v106 = vadd.f32 %v44, %v105
    %v107 = vpop.f32.mrf.mxu0
    %108 = vdwg.mxu0
    %v109 = vmax.f32 %v103, 0.0
    %v110 = vmax.f32 %v106, 0.0
    %v111 = vpack.c.bf16 %v110, %v109
    %v112 = vld [vmem:[%s3] sm:$0xf]
    %v113 = vld [vmem:[%s3 + $0x4] sm:$0xf]
    %v114 = vld [vmem:[%s3 + $0x8] sm:$0xf]
    %v115 = vld [vmem:[%s3 + $0xc] sm:$0xf]
    %v116 = vld [vmem:[%s4] sm:$0x1]
    %v118 = vlaneseq
    %v119 = vshrl.u32 %v118, 7
    %v120 = vsub.s32 0, %v119
    %v121 = vrot.slane %v116, %v120
    %v127 = vunpack.c.l.b16 %v112
    %v128 = vunpack.c.l.b16 %v113
    %v129 = vunpack.c.l.b16 %v114
    %v130 = vunpack.c.l.b16 %v115
    %v131 = vpack.c.b16 %v128, %v127
    %v132 = vpack.c.b16 %v130, %v129
    %vm135 = vcmask 261120
    %v137 = vsel %vm135, %v111, 0
    %139 = vmatprep.subr.bf16.mxu0 0
    %140 = vmatpush1.bf16.msra.mxu0 0
    %141 = vmatprep.subr.bf16.mxu0 0
    %142 = vmatpush1.bf16.msra.mxu0 0
    %143 = vmatprep.subr.bf16.mxu0 0
    %144 = vmatpush1.bf16.msra.mxu0 0
    %145 = vmatprep.subr.bf16.mxu0 0
    %146 = vmatpush1.bf16.msra.mxu0 0
    %147 = vmatprep.subr.bf16.mxu0 0
    %148 = vmatpush1.bf16.msra.mxu0 0
    %149 = vmatprep.subr.bf16.mxu0 0
    %150 = vmatpush1.bf16.msra.mxu0 0
    %151 = vmatprep.subr.bf16.mxu0 0
    %152 = vmatpush1.bf16.msra.mxu0 %v132
    %153 = vmatprep.subr.bf16.mxu0 0
    %154 = vmatpush1.bf16.msra.mxu0 %v131
    %155 = vmatprep.subr.bf16.mxu0 0
    %156 = vmatpush2.bf16.msra.mxu0 0
    %157 = vmatprep.subr.bf16.mxu0 0
    %158 = vmatpush2.bf16.msra.mxu0 0
    %159 = vmatprep.subr.bf16.mxu0 0
    %160 = vmatpush2.bf16.msra.mxu0 0
    %161 = vmatprep.subr.bf16.mxu0 0
    %162 = vmatpush2.bf16.msra.mxu0 0
    %163 = vmatprep.subr.bf16.mxu0 0
    %164 = vmatpush2.bf16.msra.mxu0 0
    %165 = vmatprep.subr.bf16.mxu0 0
    %166 = vmatpush2.bf16.msra.mxu0 0
    %167 = vmatprep.subr.bf16.mxu0 0
    %168 = vmatpush2.bf16.msra.mxu0 0
    %169 = vmatprep.subr.bf16.mxu0 0
    %170 = vmatpush2.bf16.msra.mxu0 0
    %171 = vmatprep.mubr.bf16.mxu0 0
    %172 = vmatmul.mubr.bf16.gmra.mxu0 %v137
    %v173 = vpop.f32.mrf.mxu0
    %v174 = vadd.f32 %v121, %v173
    %v175 = vpop.f32.mrf.mxu0
    %v176 = vpop.f32.mrf.mxu0
    %v177 = vadd.f32 %v121, %v176
    %v178 = vpop.f32.mrf.mxu0
    %179 = vdwg.mxu0
    %v180 = vpack.c.bf16 %v177, %v174
    %v181 = vld [vmem:[%s5] sm:$0xf]
    %v182 = vld [vmem:[%s6] sm:$0x1]
    %v184 = vlaneseq
    %v185 = vshrl.u32 %v184, 7
    %v186 = vsub.s32 0, %v185
    %v187 = vrot.slane %v182, %v186
    %vm189 = vcmask 64512
    %v191 = vsel %vm189, %v180, 0
    %vm193 = vcmask 1043456
    %v195 = vsel %vm193, %v181, 0
    %197 = vmatprep.subr.bf16.mxu0 0
    %198 = vmatpush1.bf16.msra.mxu0 0
    %199 = vmatprep.subr.bf16.mxu0 0
    %200 = vmatpush1.bf16.msra.mxu0 0
    %201 = vmatprep.subr.bf16.mxu0 0
    %202 = vmatpush1.bf16.msra.mxu0 0
    %203 = vmatprep.subr.bf16.mxu0 0
    %204 = vmatpush1.bf16.msra.mxu0 0
    %205 = vmatprep.subr.bf16.mxu0 0
    %206 = vmatpush1.bf16.msra.mxu0 0
    %207 = vmatprep.subr.bf16.mxu0 0
    %208 = vmatpush1.bf16.msra.mxu0 0
    %209 = vmatprep.subr.bf16.mxu0 0
    %210 = vmatpush1.bf16.msra.mxu0 0
    %211 = vmatprep.subr.bf16.mxu0 0
    %212 = vmatpush1.bf16.msra.mxu0 %v195
    %213 = vmatprep.subr.bf16.mxu0 0
    %214 = vmatpush2.bf16.msra.mxu0 0
    %215 = vmatprep.subr.bf16.mxu0 0
    %216 = vmatpush2.bf16.msra.mxu0 0
    %217 = vmatprep.subr.bf16.mxu0 0
    %218 = vmatpush2.bf16.msra.mxu0 0
    %219 = vmatprep.subr.bf16.mxu0 0
    %220 = vmatpush2.bf16.msra.mxu0 0
    %221 = vmatprep.subr.bf16.mxu0 0
    %222 = vmatpush2.bf16.msra.mxu0 0
    %223 = vmatprep.subr.bf16.mxu0 0
    %224 = vmatpush2.bf16.msra.mxu0 0
    %225 = vmatprep.subr.bf16.mxu0 0
    %226 = vmatpush2.bf16.msra.mxu0 0
    %227 = vmatprep.subr.bf16.mxu0 0
    %228 = vmatpush2.bf16.msra.mxu0 0
    %229 = vmatprep.mubr.bf16.mxu0 0
    %230 = vmatmul.mubr.bf16.gmra.mxu0 %v191
    %v231 = vpop.f32.mrf.mxu0
    %v232 = vadd.f32 %v187, %v231
    %v233 = vpop.f32.mrf.mxu0
    %v234 = vpop.f32.mrf.mxu0
    %v235 = vadd.f32 %v187, %v234
    %v236 = vpop.f32.mrf.mxu0
    %237 = vdwg.mxu0
    %v238 = vmax.f32 %v232, 0.0
    %v239 = vmax.f32 %v235, 0.0
    %v240 = vpack.c.bf16 %v239, %v238
    %v241 = vld [vmem:[%s7] sm:$0xf]
    %v242 = vld [vmem:[%s7 + $0x4] sm:$0xf]
    %v243 = vld [vmem:[%s7 + $0x8] sm:$0xf]
    %v244 = vld [vmem:[%s7 + $0xc] sm:$0xf]
    %v245 = vld [vmem:[%s8] sm:$0x1]
    %v247 = vlaneseq
    %v248 = vshrl.u32 %v247, 7
    %v249 = vsub.s32 0, %v248
    %v250 = vrot.slane %v245, %v249
    %v256 = vunpack.c.l.b16 %v241
    %v257 = vunpack.c.l.b16 %v242
    %v258 = vunpack.c.l.b16 %v243
    %v259 = vunpack.c.l.b16 %v244
    %v260 = vpack.c.b16 %v257, %v256
    %v261 = vpack.c.b16 %v259, %v258
    %v265 = vsel %vm135, %v240, 0
    %267 = vmatprep.subr.bf16.mxu0 0
    %268 = vmatpush1.bf16.msra.mxu0 0
    %269 = vmatprep.subr.bf16.mxu0 0
    %270 = vmatpush1.bf16.msra.mxu0 0
    %271 = vmatprep.subr.bf16.mxu0 0
    %272 = vmatpush1.bf16.msra.mxu0 0
    %273 = vmatprep.subr.bf16.mxu0 0
    %274 = vmatpush1.bf16.msra.mxu0 0
    %275 = vmatprep.subr.bf16.mxu0 0
    %276 = vmatpush1.bf16.msra.mxu0 0
    %277 = vmatprep.subr.bf16.mxu0 0
    %278 = vmatpush1.bf16.msra.mxu0 0
    %279 = vmatprep.subr.bf16.mxu0 0
    %280 = vmatpush1.bf16.msra.mxu0 %v261
    %281 = vmatprep.subr.bf16.mxu0 0
    %282 = vmatpush1.bf16.msra.mxu0 %v260
    %283 = vmatprep.subr.bf16.mxu0 0
    %284 = vmatpush2.bf16.msra.mxu0 0
    %285 = vmatprep.subr.bf16.mxu0 0
    %286 = vmatpush2.bf16.msra.mxu0 0
    %287 = vmatprep.subr.bf16.mxu0 0
    %288 = vmatpush2.bf16.msra.mxu0 0
    %289 = vmatprep.subr.bf16.mxu0 0
    %290 = vmatpush2.bf16.msra.mxu0 0
    %291 = vmatprep.subr.bf16.mxu0 0
    %292 = vmatpush2.bf16.msra.mxu0 0
    %293 = vmatprep.subr.bf16.mxu0 0
    %294 = vmatpush2.bf16.msra.mxu0 0
    %295 = vmatprep.subr.bf16.mxu0 0
    %296 = vmatpush2.bf16.msra.mxu0 0
    %297 = vmatprep.subr.bf16.mxu0 0
    %298 = vmatpush2.bf16.msra.mxu0 0
    %299 = vmatprep.mubr.bf16.mxu0 0
    %300 = vmatmul.mubr.bf16.gmra.mxu0 %v265
    %v301 = vpop.f32.mrf.mxu0
    %v302 = vadd.f32 %v250, %v301
    %v303 = vpop.f32.mrf.mxu0
    %v304 = vpop.f32.mrf.mxu0
    %v305 = vadd.f32 %v250, %v304
    %v306 = vpop.f32.mrf.mxu0
    %307 = vdwg.mxu0
    %310 = vrot.lane.b32.xlu0 %v302, 8
    %v311 = vpop.permute.xlu0 %310
    %312 = vrot.lane.b32.xlu0 %v305, 8
    %v313 = vpop.permute.xlu0 %312
    %v316 = vsel %vm189, %v174, %v311
    %v317 = vsel %vm189, %v177, %v313
    %v318 = vpack.c.bf16 %v317, %v316
    %v320 = vunpack.c.l.b16 %v318
    %v321 = vunpack.c.h.b16 %v318
    %v322 = vpack.c.b16 %v320, %v320
    %v323 = vpack.c.b16 %v321, %v321
    %vm326 = vcmask 224256
    %327 = vst.msk [vmem:[#allocation2] sm:$0xf] %vm326, %v322
    %328 = vst.msk [vmem:[#allocation2 + $0x4] sm:$0xf] %vm326, %v323
    // Predicated region
    $region38: #{tpu_custom_call.1} parent=1 // pred_check
      _
    $region39: #{tpu_custom_call.1} parent=1 // pred_check_branch
      %330 = sbr.rel (0) target = $region41
    $region40: #{tpu_custom_call.1} parent=1 // pred_region
      %s332 = ssub.s32 128, 128
      %333 = vsyncadd [#allocation3], %s332
      %s334 = sshll.u32 [#allocation2], 4
      %s335 = int_to_ptr.vmem [resolvable:$true] %s334
      %340 = dma.vmem_to_hbm [thread:$0]  %s335, 128, %s9, [#allocation3], 64, 64, 4
    $region41: #{tpu_custom_call.1} parent=1 // pred_fallthru
      _
    // Predicated region
    $region42: #{tpu_custom_call.1} parent=1 // pred_check
      _
    $region43: #{tpu_custom_call.1} parent=1 // pred_check_branch
      %342 = sbr.rel (0) target = $region45
    $region44: #{tpu_custom_call.1} parent=1 // pred_region
      %343 = dma.done [#allocation3], 128
    $region45: #{tpu_custom_call.1} parent=1 // pred_fallthru
      _
    %344 = vsyncpa [#allocation3], 1

</llo_original>
